<compile_context>
chip_gen: v7x
topology: tpu7x:2x2x1
jax: 0.10.0
libtpu: 0.0.40
codegen_flags: <defaults>
</compile_context>

<pallas_src>
import jax
import jax.numpy as jnp
from jax.experimental import pallas as pl
from jax.experimental.pallas import tpu as pltpu


def _identity_copy_kernel(x_ref, o_ref):
    # One tile lives in VMEM; single vectorized copy.  Pallas double-buffers
    # the HBM<->VMEM DMAs across grid steps automatically.
    o_ref[...] = x_ref[...]


_TILE_BYTES_TARGET = 2 * 1024 * 1024  # ~2 MiB tiles: 4 live buffers ~ 8 MiB


def _pick_lane_width(total_elems):
    """Largest multiple-of-128 width (up to 8192) that divides total_elems."""
    for k in (8192, 4096, 2048, 1024, 512, 256, 128):
        if total_elems % k == 0:
            return k
    return None


def _tiled_copy(flat2d):
    """Pipelined identity copy of a 2D row-major array via Pallas."""
    rows, width = flat2d.shape
    itemsize = jnp.dtype(flat2d.dtype).itemsize

    if rows <= 8:
        tile_rows = rows  # block equals full dim -> always legal
    else:
        target_rows = max(8, _TILE_BYTES_TARGET // (width * itemsize))
        tile_rows = min(rows, target_rows)
        tile_rows = max(8, (tile_rows // 8) * 8)  # sublane multiple of 8

    grid = (pl.cdiv(rows, tile_rows),)

    return pl.pallas_call(
        _identity_copy_kernel,
        out_shape=jax.ShapeDtypeStruct((rows, width), flat2d.dtype),
        grid=grid,
        in_specs=[pl.BlockSpec((tile_rows, width), lambda i: (i, 0))],
        out_specs=pl.BlockSpec((tile_rows, width), lambda i: (i, 0)),
        compiler_params=pltpu.CompilerParams(
            # Lets the runtime shard the row axis across both TensorCores on
            # multi-core parts (v7x); harmless elsewhere.
            dimension_semantics=("parallel",),
        ),
    )(flat2d)


def unflatten(x, C=128, H=7, W=7):
    """Pallas equivalent of Unflatten(N=-1, C, H, W).forward(x).

    x: (N, C*H*W) array. Returns (N, C, H, W) array, same dtype.
    """
    N, D = x.shape
    assert D == C * H * W, f"expected last dim {C * H * W}, got {D}"
    total = N * D

    lane_width = _pick_lane_width(total)
    if lane_width is not None:
        # Lane-dense path: view the whole buffer as (rows, K) with K a large
        # multiple of 128 so every store is a full-width unmasked vst.  Both
        # reshapes are metadata-only on a contiguous row-major buffer.
        flat2d = x.reshape(total // lane_width, lane_width)
        out2d = _tiled_copy(flat2d)
        return out2d.reshape(N, C, H, W)

    # Fallback (D not a multiple of 128 and no global factorization exists):
    # keep the (N, D) layout and tile over rows.  The last vreg of each row is
    # partially masked, but the copy is still tiled + pipelined.
    flat = _tiled_copy(x)
    return flat.reshape(N, C, H, W)


if __name__ == "__main__":
    key = jax.random.PRNGKey(0)

    # Case 1: small shape consistent with the assignment's generator usage
    # (C=4, H=7, W=7) -> D=196, exercises the non-lane-dense fallback path.
    N1, C1, H1, W1 = 2, 4, 7, 7
    x1 = jax.random.normal(key, (N1, C1 * H1 * W1), dtype=jnp.float32)
    out1 = jax.block_until_ready(unflatten(x1, C=C1, H=H1, W=W1))
    ref1 = x1.reshape(N1, C1, H1, W1)
    assert out1.shape == (N1, C1, H1, W1) and out1.dtype == x1.dtype
    assert jnp.array_equal(out1, ref1)

    # Case 2: lane-dense path (total elements divisible by 128), matches the
    # module default C=128, H=7, W=7 at a small batch.
    N2, C2, H2, W2 = 4, 128, 7, 7
    x2 = jax.random.normal(jax.random.PRNGKey(1), (N2, C2 * H2 * W2),
                           dtype=jnp.float32)
    out2 = jax.block_until_ready(unflatten(x2, C=C2, H=H2, W=W2))
    ref2 = x2.reshape(N2, C2, H2, W2)
    assert out2.shape == (N2, C2, H2, W2) and out2.dtype == x2.dtype
    assert jnp.array_equal(out2, ref2)

    print("KERNEL_OK")
</pallas_src>

<mosaic_0001>
module attributes {stable_mosaic.version = 11 : i64} {
  func.func @_identity_copy_kernel(%arg0: i32, %arg1: memref<2x196xf32, #tpu.memory_space<vmem>>, %arg2: memref<2x196xf32, #tpu.memory_space<vmem>>) attributes {dimension_semantics = [#tpu.dimension_semantics<parallel>], iteration_bounds = array<i64: 1>, scalar_prefetch = 0 : i64, scratch_operands = 0 : i64, tpu.core_type = #tpu.core_type<tc>, window_params = [{transform_indices = @transform_0, window_bounds = array<i64: 2, 196>}, {transform_indices = @transform_1, window_bounds = array<i64: 2, 196>}]} {
    %c0 = arith.constant 0 : index
    %c0_0 = arith.constant 0 : index
    %0 = vector.load %arg1[%c0, %c0_0] : memref<2x196xf32, #tpu.memory_space<vmem>>, vector<2x196xf32>
    %c0_1 = arith.constant 0 : index
    %c0_2 = arith.constant 0 : index
    %1 = vector.load %arg2[%c0_1, %c0_2] : memref<2x196xf32, #tpu.memory_space<vmem>>, vector<2x196xf32>
    tpu.vector_store %arg2[%c0_1, %c0_2], %0 {strides = array<i32>} : memref<2x196xf32, #tpu.memory_space<vmem>>, vector<2x196xf32>,
    return
  }
  func.func @transform_0(%arg0: i32) -> (i32, i32) {
    %c0_i32 = arith.constant 0 : i32
    %c0_i32_0 = arith.constant 0 : i32
    return %arg0, %c0_i32 : i32, i32
  }
  func.func @transform_1(%arg0: i32) -> (i32, i32) {
    %c0_i32 = arith.constant 0 : i32
    %c0_i32_0 = arith.constant 0 : i32
    return %arg0, %c0_i32 : i32, i32
  }
}

</mosaic_0001>

<llo_original>
// kernel: tpu_custom_call.1
$region0: #{tpu_custom_call.1}
  #allocation0 [shape = 'u32[]', space=smem, size = 0x4, offset = 0x4, fixed_abs, tag = 'smem constant byte address 0x4 - core index']
  #allocation1 [shape = 'u32[144,128]{1,0:T(1,128)}', space=vmem, size = 0x12000, scoped, tag = 'internal scratch']
  %s0 = inlined_call_operand.hbm [shape: f32[2,196], index: 0, kind: input, shape index: {}]
  %s1 = inlined_call_operand.hbm [shape: f32[2,196], index: 1, kind: output, shape index: {}]
  %s2 = sld [smem:[#allocation0]]
  $region18: #{tpu_custom_call.1} parent=0
    _
  %s4 = ssub.s32 1, %s2
  %s5 = scalar_select 0, %s4, %s2
  $region1: #{tpu_custom_call.1} parent=0
    #allocation2 [shape = 'u8[2048]{0}', space=vmem, size = 0x800, scoped, tag = 'input window, operand 0, single buffered']
    #allocation3 [shape = 's32[1]{0}', space=sflag, size = 0x4, scoped, tag = 'scoped memory for tpu_custom_call.1']
    #allocation4 [shape = 's32[1]{0}', space=sflag, size = 0x4, scoped, tag = 'scoped memory for tpu_custom_call.1']
    #allocation5 [shape = 'u8[2048]{0}', space=vmem, size = 0x800, scoped, tag = 'output window, operand 0, single buffered']
    %6 = vsyncpa [#allocation3], 0
    %7 = vsyncpa [#allocation4], 0
    // Predicated region
    $region2: #{tpu_custom_call.1} parent=1 // pred_check
      _
    $region3: #{tpu_custom_call.1} parent=1 // pred_check_branch
      %9 = sbr.rel (0) target = $region5
    $region4: #{tpu_custom_call.1} parent=1 // pred_region
      %s11 = ssub.s32 64, 64
      %12 = vsyncadd [#allocation3], %s11
      %s14 = sshll.u32 [#allocation2], 4
      %s15 = int_to_ptr.vmem [resolvable:$true] %s14
      %17 = dma.hbm_to_vmem [thread:$0]  %s0, 64, %s15, [#allocation3]
    $region5: #{tpu_custom_call.1} parent=1 // pred_fallthru
      _
    // Predicated region
    $region6: #{tpu_custom_call.1} parent=1 // pred_check
      _
    $region7: #{tpu_custom_call.1} parent=1 // pred_check_branch
      %19 = sbr.rel (0) target = $region9
    $region8: #{tpu_custom_call.1} parent=1 // pred_region
      %20 = dma.done [#allocation3], 64
    $region9: #{tpu_custom_call.1} parent=1 // pred_fallthru
      _
    %v21 = vld [vmem:[#allocation2] sm:$0xf]
    %vm22 = vcmask 1041408
    %vm23 = vcmask 551938
    %vm24 = vmor %vm23, %vm22
    %25 = vst.msk [vmem:[#allocation5] sm:$0xf] %vm24, %v21
    // Predicated region
    $region10: #{tpu_custom_call.1} parent=1 // pred_check
      _
    $region11: #{tpu_custom_call.1} parent=1 // pred_check_branch
      %27 = sbr.rel (0) target = $region13
    $region12: #{tpu_custom_call.1} parent=1 // pred_region
      %s29 = ssub.s32 64, 64
      %30 = vsyncadd [#allocation4], %s29
      %s32 = sshll.u32 [#allocation5], 4
      %s33 = int_to_ptr.vmem [resolvable:$true] %s32
      %35 = dma.vmem_to_hbm [thread:$0]  %s33, 64, %s1, [#allocation4]
    $region13: #{tpu_custom_call.1} parent=1 // pred_fallthru
      _
    // Predicated region
    $region14: #{tpu_custom_call.1} parent=1 // pred_check
      _
    $region15: #{tpu_custom_call.1} parent=1 // pred_check_branch
      %37 = sbr.rel (0) target = $region17
    $region16: #{tpu_custom_call.1} parent=1 // pred_region
      %38 = dma.done [#allocation4], 64
    $region17: #{tpu_custom_call.1} parent=1 // pred_fallthru
      _
    %39 = vsyncpa [#allocation3], 1
    %40 = vsyncpa [#allocation4], 1

</llo_original>
